<compile_context>
chip_gen: v6e
topology: v6e:2x2x1
jax: 0.10.0
libtpu: 0.0.40
codegen_flags: <defaults>
</compile_context>

<pallas_src>
import jax
import jax.numpy as jnp
from jax.experimental import pallas as pl
from jax.experimental.pallas import tpu as pltpu


def _round_up(a, b):
    return (a + b - 1) // b * b


def _aspp_matmul_kernel(w_ref, x_ref, o_ref):
    """One (image, spatial-tile) block: fused im2col-matmul (+ folded BN) + ReLU.

    w_ref : (Cout_p, K_p)     bf16  BN-scale-folded weights, last used column
                                    holds the folded BN bias
    x_ref : (K_p, HW_TILE)    bf16  im2col patches; row K holds 1.0 (bias row)
    o_ref : (Cout_p, HW_TILE) f32   conv + BN + ReLU output tile (NCHW layout)
    """
    acc = jnp.dot(w_ref[...], x_ref[...], preferred_element_type=jnp.float32)
    o_ref[...] = jnp.maximum(acc, 0.0).astype(o_ref.dtype)


def aspp_block(x_nchw, weight_oihw, gamma, beta, running_mean, running_var,
               *, padding, dilation, eps=1e-5, hw_tile=None):
    """ASPPBlock forward. x_nchw: (N, Cin, H, W) -> (N, Cout, H_out, W_out)."""
    N, Cin, H, W = x_nchw.shape
    Cout, Cin_w, KH, KW = weight_oihw.shape
    assert Cin == Cin_w

    H_out = H + 2 * padding - dilation * (KH - 1)
    W_out = W + 2 * padding - dilation * (KW - 1)
    HW = H_out * W_out
    K = KH * KW * Cin

    # --- glue (plain JAX, bf16 data movement): zero pad, im2col --------------
    xb = x_nchw.astype(jnp.bfloat16)
    x_pad = jnp.pad(xb, ((0, 0), (0, 0), (padding, padding), (padding, padding)))
    # One shifted view per tap; K-major order (kh, kw, ci) must match weights.
    patches = [
        x_pad[:, :, kh * dilation:kh * dilation + H_out,
                    kw * dilation:kw * dilation + W_out]        # (N, Cin, Ho, Wo)
        for kh in range(KH) for kw in range(KW)
    ]
    cols = jnp.stack(patches, axis=1).reshape(N, K, HW)         # (N, K, Ho*Wo)

    # --- BN folding (f32 on the tiny weight tensor only) ---------------------
    f32 = jnp.float32
    scale = gamma.astype(f32) / jnp.sqrt(running_var.astype(f32) + eps)
    bias = beta.astype(f32) - running_mean.astype(f32) * scale
    w_scaled = weight_oihw.astype(f32) * scale[:, None, None, None]
    w2d = w_scaled.transpose(0, 2, 3, 1).reshape(Cout, K)       # K = (kh, kw, ci)
    # Fold the BN bias into an extra weight column paired with a ones row in
    # the im2col slab (uses the K padding that exists anyway).
    w_aug = jnp.concatenate([w2d, bias[:, None]], axis=1)       # (Cout, K+1)

    # --- pad to hardware-friendly extents (zeros contribute nothing) ---------
    K_p = _round_up(K + 1, 16)          # bf16 sublane packing; +1 = bias row
    Cout_p = _round_up(Cout, 8)
    if hw_tile is None:
        hw_tile = _round_up(HW, 128)    # one lane-dense spatial tile per image
    HW_p = _round_up(HW, hw_tile)
    assert hw_tile % 128 == 0 and HW_p % hw_tile == 0

    ones_row = jnp.ones((N, 1, HW), jnp.bfloat16)
    cols_aug = jnp.concatenate([cols, ones_row], axis=1)        # (N, K+1, HW)
    cols_p = jnp.pad(cols_aug, ((0, 0), (0, K_p - (K + 1)), (0, HW_p - HW)))
    w_p = jnp.pad(w_aug, ((0, Cout_p - Cout),
                          (0, K_p - (K + 1)))).astype(jnp.bfloat16)

    grid = (N, HW_p // hw_tile)
    out3d = pl.pallas_call(
        _aspp_matmul_kernel,
        out_shape=jax.ShapeDtypeStruct((N, Cout_p, HW_p), jnp.float32),
        grid_spec=pltpu.PrefetchScalarGridSpec(
            num_scalar_prefetch=0,
            grid=grid,
            in_specs=[
                # BN-folded weights: resident across the whole grid.
                pl.BlockSpec((Cout_p, K_p), lambda n, j: (0, 0)),
                # im2col slab: one (K_p, hw_tile) lane-dense tile per step.
                pl.BlockSpec((None, K_p, hw_tile), lambda n, j: (n, 0, j)),
            ],
            # Output already in (N, C, HW) i.e. NCHW layout -> no XLA transpose.
            out_specs=pl.BlockSpec((None, Cout_p, hw_tile), lambda n, j: (n, 0, j)),
        ),
        compiler_params=pltpu.CompilerParams(
            dimension_semantics=("parallel", "parallel"),
        ),
    )(w_p, cols_p)

    out = out3d[:, :Cout, :HW].reshape(N, Cout, H_out, W_out)
    return out


def _reference(x_nchw, weight_oihw, gamma, beta, running_mean, running_var,
               *, padding, dilation, eps=1e-5):
    """Pure-JAX f32 reference (lax conv) matching the PyTorch module."""
    y = jax.lax.conv_general_dilated(
        x_nchw.astype(jnp.float32), weight_oihw.astype(jnp.float32),
        window_strides=(1, 1),
        padding=((padding, padding), (padding, padding)),
        rhs_dilation=(dilation, dilation),
        dimension_numbers=("NCHW", "OIHW", "NCHW"))
    scale = gamma / jnp.sqrt(running_var + eps)
    bias = beta - running_mean * scale
    y = y * scale[None, :, None, None] + bias[None, :, None, None]
    return jnp.maximum(y, 0.0)


if __name__ == "__main__":
    # Small shapes consistent with the module.
    N, Cin, H, W = 2, 4, 16, 16
    Cout = 8
    kernel_size, padding, dilation = 3, 2, 2

    key = jax.random.PRNGKey(0)
    k_x, k_w, k_g, k_b, k_m, k_v = jax.random.split(key, 6)

    x = jax.random.normal(k_x, (N, Cin, H, W), jnp.float32)
    # Conv2d weight (Cout, Cin, KH, KW), bias=False.
    weight = 0.1 * jax.random.normal(k_w, (Cout, Cin, kernel_size, kernel_size),
                                     jnp.float32)
    # Deterministic (synthetic) BatchNorm parameters / running statistics.
    gamma = 1.0 + 0.1 * jax.random.normal(k_g, (Cout,), jnp.float32)
    beta = 0.1 * jax.random.normal(k_b, (Cout,), jnp.float32)
    running_mean = 0.05 * jax.random.normal(k_m, (Cout,), jnp.float32)
    running_var = 1.0 + 0.1 * jax.nn.softplus(jax.random.normal(k_v, (Cout,),
                                                                jnp.float32))

    out = aspp_block(x, weight, gamma, beta, running_mean, running_var,
                     padding=padding, dilation=dilation)
    out = jax.block_until_ready(out)

    ref = _reference(x, weight, gamma, beta, running_mean, running_var,
                     padding=padding, dilation=dilation)

    H_out = H + 2 * padding - dilation * (kernel_size - 1)
    W_out = W + 2 * padding - dilation * (kernel_size - 1)
    assert out.shape == (N, Cout, H_out, W_out), out.shape
    # bf16 MXU inputs (f32 accumulation) vs the f32 reference -> loose tolerance.
    assert jnp.allclose(out, ref, atol=2e-2, rtol=2e-2), float(
        jnp.max(jnp.abs(out - ref)))

    print("KERNEL_OK")
</pallas_src>

<mosaic_0001>
module attributes {stable_mosaic.version = 11 : i64} {
  func.func @_aspp_matmul_kernel(%arg0: i32, %arg1: i32, %arg2: memref<8x48xbf16, #tpu.memory_space<vmem>>, %arg3: memref<1x48x256xbf16, #tpu.memory_space<vmem>>, %arg4: memref<1x8x256xf32, #tpu.memory_space<vmem>>) attributes {dimension_semantics = [#tpu.dimension_semantics<parallel>, #tpu.dimension_semantics<parallel>], iteration_bounds = array<i64: 2, 1>, scalar_prefetch = 0 : i64, scratch_operands = 0 : i64, tpu.core_type = #tpu.core_type<tc>, window_params = [{pipeline_mode = #tpu.pipeline_mode<synchronous>, transform_indices = @transform_0, window_bounds = array<i64: 8, 48>}, {transform_indices = @transform_1, window_bounds = array<i64: 1, 48, 256>}, {transform_indices = @transform_2, window_bounds = array<i64: 1, 8, 256>}]} {
    %c0 = arith.constant 0 : index
    %c0_0 = arith.constant 0 : index
    %0 = vector.load %arg2[%c0, %c0_0] : memref<8x48xbf16, #tpu.memory_space<vmem>>, vector<8x48xbf16>
    %c0_1 = arith.constant 0 : index
    %c0_2 = arith.constant 0 : index
    %c0_3 = arith.constant 0 : index
    %1 = vector.load %arg3[%c0_1, %c0_2, %c0_3] : memref<1x48x256xbf16, #tpu.memory_space<vmem>>, vector<1x48x256xbf16>
    %2 = vector.shape_cast %1 : vector<1x48x256xbf16> to vector<48x256xbf16>
    %cst = arith.constant dense<0.000000e+00> : vector<8x256xf32>
    %3 = tpu.matmul %0, %2, %cst {dimension_numbers = #tpu.dot_dimension_numbers<[1], [0], [0], [1], [0, 0, 1, 1], [], []>} : vector<8x48xbf16>, vector<48x256xbf16>, vector<8x256xf32> -> vector<8x256xf32>
    %cst_4 = arith.constant 0.000000e+00 : f32
    %4 = vector.broadcast %cst_4 : f32 to vector<8x256xf32>
    %5 = arith.maximumf %3, %4 : vector<8x256xf32>
    %c0_5 = arith.constant 0 : index
    %c0_6 = arith.constant 0 : index
    %c0_7 = arith.constant 0 : index
    %6 = vector.load %arg4[%c0_5, %c0_6, %c0_7] : memref<1x8x256xf32, #tpu.memory_space<vmem>>, vector<1x8x256xf32>
    %7 = vector.shape_cast %6 : vector<1x8x256xf32> to vector<8x256xf32>
    %8 = vector.shape_cast %5 : vector<8x256xf32> to vector<1x8x256xf32>
    tpu.vector_store %arg4[%c0_5, %c0_6, %c0_7], %8 {strides = array<i32>} : memref<1x8x256xf32, #tpu.memory_space<vmem>>, vector<1x8x256xf32>,
    return
  }
  func.func @transform_0(%arg0: i32, %arg1: i32) -> (i32, i32) {
    %c0_i32 = arith.constant 0 : i32
    %c0_i32_0 = arith.constant 0 : i32
    %c0_i32_1 = arith.constant 0 : i32
    return %c0_i32, %c0_i32_0 : i32, i32
  }
  func.func @transform_1(%arg0: i32, %arg1: i32) -> (i32, i32, i32) {
    %c0_i32 = arith.constant 0 : i32
    %c0_i32_0 = arith.constant 0 : i32
    return %arg0, %c0_i32, %arg1 : i32, i32, i32
  }
  func.func @transform_2(%arg0: i32, %arg1: i32) -> (i32, i32, i32) {
    %c0_i32 = arith.constant 0 : i32
    %c0_i32_0 = arith.constant 0 : i32
    return %arg0, %c0_i32, %arg1 : i32, i32, i32
  }
}

</mosaic_0001>

<llo_original>
// kernel: tpu_custom_call.1
$region0: #{tpu_custom_call.1}
  #allocation0 [shape = 'u32[]', space=smem, size = 0x4, offset = 0x4, fixed_abs, tag = 'smem constant byte address 0x4 - core index']
  #allocation1 [shape = 'u32[144,128]{1,0:T(1,128)}', space=vmem, size = 0x12000, scoped, tag = 'internal scratch']
  %s0 = inlined_call_operand.hbm [shape: bf16[8,48], index: 0, kind: input, shape index: {}]
  %s1 = inlined_call_operand.hbm [shape: bf16[2,48,256], index: 1, kind: input, shape index: {}]
  %s2 = inlined_call_operand.hbm [shape: f32[2,8,256], index: 2, kind: output, shape index: {}]
  %s3 = sld [smem:[#allocation0]]
  $region49: #{tpu_custom_call.1} parent=0
    _
  %s5 = ssub.s32 1, %s3
  %s6 = scalar_select 0, %s5, %s3
  $region1: #{tpu_custom_call.1} parent=0
    #allocation2 [shape = 'u8[2048]{0}', space=vmem, size = 0x800, scoped, tag = 'input window, operand 0, single buffered']
    #allocation3 [shape = 's32[2]{0}', space=sflag, size = 0x8, scoped, tag = 'scoped memory for tpu_custom_call.1']
    #allocation4 [shape = 's32[2]{0}', space=sflag, size = 0x8, scoped, tag = 'scoped memory for tpu_custom_call.1']
    #allocation5 [shape = 'u8[49152]{0}', space=vmem, size = 0xc000, scoped, tag = 'input window, operand 1']
    #allocation6 [shape = 's32[2]{0}', space=sflag, size = 0x8, scoped, tag = 'scoped memory for tpu_custom_call.1']
    #allocation7 [shape = 'u8[16384]{0}', space=vmem, size = 0x4000, scoped, tag = 'output window, operand 0']
    %7 = vsyncpa [#allocation3], 0
    %8 = vsyncpa [#allocation6], 0
    %s9 = scalar_lea.sflag [#allocation6], 1
    %10 = vsyncpa %s9, 0
    %11 = vsyncpa [#allocation4], 0
    %s12 = scalar_lea.sflag [#allocation4], 1
    %13 = vsyncpa %s12, 0
    loop: start=0, step=1, limit=4
    $region2: #{tpu_custom_call.1} parent=1 // loop_pre_header
      _
    $region3: #{tpu_custom_call.1} parent=1 // loop_header
      %s15 = sphi 0, %s19
      %p16 = scmp.ge.s32.totalorder %s15, 4
      %s22 = sphi 0, %s34
      %s23 = sphi 0, %s30
      %s24 = sphi 0, %s22
      %s25 = sphi 0, %s23
      %s26 = sphi 0, %s24
      %s27 = sphi 0, %s25
      %s35 = sphi 0, %s35
      %s37 = sphi 0, %s35
      %s38 = sphi 0, %s37
      %s52 = sphi 0, %s38
      %s60 = sphi 0, %s62
      %s63 = sphi 0, %s60
      %s64 = sphi 0, %s63
      %s80 = sphi 0, %s64
      %s88 = sphi 0, %s90
      %s91 = sphi 0, %s88
      %s92 = sphi 0, %s91
      %s108 = sphi 0, %s92
    $region4: #{tpu_custom_call.1} parent=1 // loop_header_branch
      %18 = sbr.rel (%p16) target = $region8
    $region5: #{tpu_custom_call.1} parent=1 // loop_body
      %s20 = ssub.s32 %s15, 1
      %s21 = ssub.s32 %s15, 2
      %s28 = sadd.s32 1, %s23
      %p29 = scmp.ge.s32.totalorder %s28, 1
      %s30 = scalar_select %p29, 0, %s28
      %s31 = sadd.s32 1, %s22
      %s32 = scalar_select %p29, %s31, %s22
      %p33 = scmp.ge.s32.totalorder %s32, 2
      %s34 = scalar_select %p33, 0, %s32
      %s36 = sadd.s32 %s35, 1
      %p39 = scmp.eq.s32.totalorder %s15, 1
      %p40 = scmp.ne.s32.totalorder %s35, %s37
      %p41 = scmp.eq.s32.totalorder %s15, 0
      %p42 = por %p40, %p41
      %p43 = scmp.ne.s32.totalorder %s35, %s37
      %p44 = scmp.eq.s32.totalorder %s20, 1
      %p45 = por %p43, %p44
      %p46 = scmp.ne.s32.totalorder %s37, %s38
      %p47 = scmp.eq.s32.totalorder %s20, 0
      %p48 = por %p46, %p47
      %p49 = scmp.ne.s32.totalorder %s37, %s38
      %p50 = scmp.eq.s32.totalorder %s21, 1
      %p51 = por %p49, %p50
      %p53 = scmp.ne.s32.totalorder %s38, %s52
      %p54 = scmp.eq.s32.totalorder %s21, 0
      %p55 = por %p53, %p54
      %s56 = ssub.s32 %s22, %s34
      %s57 = ssub.s32 %s23, %s30
      %s58 = sor.u32 %s56, %s57
      %p59 = scmp.eq.s32.totalorder %s58, 0
      %s61 = sadd.s32 %s60, 1
      %s62 = scalar_select %p59, %s60, %s61
      %p65 = pneg %p59
      %p66 = scmp.eq.s32.totalorder %s15, 1
      %p67 = por %p65, %p66
      %p68 = scmp.ne.s32.totalorder %s60, %s63
      %p69 = scmp.eq.s32.totalorder %s15, 0
      %p70 = por %p68, %p69
      %p71 = scmp.ne.s32.totalorder %s60, %s63
      %p72 = scmp.eq.s32.totalorder %s20, 1
      %p73 = por %p71, %p72
      %p74 = scmp.ne.s32.totalorder %s63, %s64
      %p75 = scmp.eq.s32.totalorder %s20, 0
      %p76 = por %p74, %p75
      %p77 = scmp.ne.s32.totalorder %s63, %s64
      %p78 = scmp.eq.s32.totalorder %s21, 1
      %p79 = por %p77, %p78
      %p81 = scmp.ne.s32.totalorder %s64, %s80
      %p82 = scmp.eq.s32.totalorder %s21, 0
      %p83 = por %p81, %p82
      %s84 = ssub.s32 %s22, %s34
      %s85 = ssub.s32 %s23, %s30
      %s86 = sor.u32 %s84, %s85
      %p87 = scmp.eq.s32.totalorder %s86, 0
      %s89 = sadd.s32 %s88, 1
      %s90 = scalar_select %p87, %s88, %s89
      %p93 = pneg %p87
      %p94 = scmp.eq.s32.totalorder %s15, 1
      %p95 = por %p93, %p94
      %p96 = scmp.ne.s32.totalorder %s88, %s91
      %p97 = scmp.eq.s32.totalorder %s15, 0
      %p98 = por %p96, %p97
      %p99 = scmp.ne.s32.totalorder %s88, %s91
      %p100 = scmp.eq.s32.totalorder %s20, 1
      %p101 = por %p99, %p100
      %p102 = scmp.ne.s32.totalorder %s91, %s92
      %p103 = scmp.eq.s32.totalorder %s20, 0
      %p104 = por %p102, %p103
      %p105 = scmp.ne.s32.totalorder %s91, %s92
      %p106 = scmp.eq.s32.totalorder %s21, 1
      %p107 = por %p105, %p106
      %p109 = scmp.ne.s32.totalorder %s92, %s108
      %p110 = scmp.eq.s32.totalorder %s21, 0
      %p111 = por %p109, %p110
      %p112 = scmp.le.s32.totalorder 1, %s15
      %p113 = scmp.lt.s32.totalorder %s15, 3
      %p114 = pnand %p112, %p113
      %p115 = pneg %p114
      // Predicated region
      $region9: #{tpu_custom_call.1} parent=5 // pred_check
        _
      $region10: #{tpu_custom_call.1} parent=5 // pred_check_branch
        %117 = sbr.rel (%p114) target = $region12
      $region11: #{tpu_custom_call.1} parent=5 // pred_region
        %s118 = ssub.s32 %s15, 1
        // Predicated region
        $region13: #{tpu_custom_call.1} parent=11 // pred_check
          %p119 = pneg %p48
        $region14: #{tpu_custom_call.1} parent=11 // pred_check_branch
          %121 = sbr.rel (%p119) target = $region16
        $region15: #{tpu_custom_call.1} parent=11 // pred_region
          %s123 = ssub.s32 64, 64
          %124 = vsyncadd [#allocation3], %s123
          %s126 = sshll.u32 [#allocation2], 4
          %s127 = int_to_ptr.vmem [resolvable:$true] %s126
          %129 = dma.hbm_to_vmem [thread:$0]  %s0, 64, %s127, [#allocation3]
        $region16: #{tpu_custom_call.1} parent=11 // pred_fallthru
          _
      $region12: #{tpu_custom_call.1} parent=5 // pred_fallthru
        _
      %p130 = scmp.lt.s32.totalorder %s15, 2
      // Predicated region
      $region17: #{tpu_custom_call.1} parent=5 // pred_check
        %p131 = pneg %p130
      $region18: #{tpu_custom_call.1} parent=5 // pred_check_branch
        %133 = sbr.rel (%p131) target = $region20
      $region19: #{tpu_custom_call.1} parent=5 // pred_region
        // Predicated region
        $region21: #{tpu_custom_call.1} parent=19 // pred_check
          %p134 = pneg %p70
        $region22: #{tpu_custom_call.1} parent=19 // pred_check_branch
          %136 = sbr.rel (%p134) target = $region24
        $region23: #{tpu_custom_call.1} parent=19 // pred_region
          %s137 = sand.u32 %s60, 1
          %s138 = scalar_lea.sflag [#allocation6], %s137
          %s139 = sand.u32 %s60, 1
          %s140 = smul.addr %s139, 48
          %s141 = scalar_lea.vmem [#allocation5], %s140
          %s142 = smul.u32 2, %s23
          %s144 = ssub.s32 768, 768
          %145 = vsyncadd %s138, %s144
          %s146 = smul.addr %s22, 12
          %s147 = sadd.s32 %s142, %s146
          %s148 = smul.addr %s147, 64
          %s149 = scalar_lea.hbm %s1, %s148
          %s150 = sshll.u32 %s141, 4
          %s151 = int_to_ptr.vmem [resolvable:$true] %s150
          %156 = dma.hbm_to_vmem [thread:$0]  %s149, 768, %s151, %s138, 128, 128, 8
        $region24: #{tpu_custom_call.1} parent=19 // pred_fallthru
          _
      $region20: #{tpu_custom_call.1} parent=5 // pred_fallthru
        _
      %p157 = scmp.le.s32.totalorder 1, %s15
      %p158 = scmp.lt.s32.totalorder %s15, 3
      %p159 = pnand %p157, %p158
      %p160 = pneg %p159
      // Predicated region
      $region25: #{tpu_custom_call.1} parent=5 // pred_check
        _
      $region26: #{tpu_custom_call.1} parent=5 // pred_check_branch
        %162 = sbr.rel (%p159) target = $region28
      $region27: #{tpu_custom_call.1} parent=5 // pred_region
        %s163 = ssub.s32 %s15, 1
        // Predicated region
        $region29: #{tpu_custom_call.1} parent=27 // pred_check
          %p164 = pneg %p48
        $region30: #{tpu_custom_call.1} parent=27 // pred_check_branch
          %166 = sbr.rel (%p164) target = $region32
        $region31: #{tpu_custom_call.1} parent=27 // pred_region
          %167 = dma.done [#allocation3], 64
        $region32: #{tpu_custom_call.1} parent=27 // pred_fallthru
          _
        %s168 = sand.u32 %s63, 1
        %s169 = scalar_lea.sflag [#allocation6], %s168
        %s170 = sand.u32 %s63, 1
        %s171 = smul.addr %s170, 48
        %s172 = scalar_lea.vmem [#allocation5], %s171
        // Predicated region
        $region33: #{tpu_custom_call.1} parent=27 // pred_check
          %p173 = pneg %p76
        $region34: #{tpu_custom_call.1} parent=27 // pred_check_branch
          %175 = sbr.rel (%p173) target = $region36
        $region35: #{tpu_custom_call.1} parent=27 // pred_region
          %176 = dma.done %s169, 768
        $region36: #{tpu_custom_call.1} parent=27 // pred_fallthru
          _
        %p177 = pneg %p48
        %p178 = pneg %p45
        %s179 = sand.u32 %s63, 1
        %s180 = scalar_lea.sflag [#allocation6], %s179
        %s181 = sand.u32 %s63, 1
        %s182 = smul.addr %s181, 48
        %s183 = scalar_lea.vmem [#allocation5], %s182
        %p184 = pneg %p76
        %p185 = pneg %p73
        %p186 = pneg %p104
        %p187 = pneg %p101
        %s188 = sand.u32 %s91, 1
        %s189 = scalar_lea.sflag [#allocation4], %s188
        %s190 = sand.u32 %s91, 1
        %s191 = smul.addr %s190, 16
        %s192 = scalar_lea.vmem [#allocation7], %s191
        %s193 = smul.u32 2, %s25
        %s194 = smul.u32 2, %s25
        %v196 = vld [vmem:[#allocation2] sm:$0xf]
        %v197 = vld [vmem:[%s172] sm:$0xff]
        %v198 = vld [vmem:[%s172 + $0x8] sm:$0xff]
        %v199 = vld [vmem:[%s172 + $0x10] sm:$0xff]
        %v200 = vld [vmem:[%s172 + $0x18] sm:$0xff]
        %v201 = vld [vmem:[%s172 + $0x20] sm:$0xff]
        %v202 = vld [vmem:[%s172 + $0x28] sm:$0xff]
        %v209 = vunpack.c.l.b16 %v197
        %v210 = vunpack.c.h.b16 %v197
        %v211 = vunpack.c.l.b16 %v198
        %v212 = vunpack.c.h.b16 %v198
        %v213 = vunpack.c.l.b16 %v199
        %v214 = vunpack.c.h.b16 %v199
        %v215 = vunpack.c.l.b16 %v200
        %v216 = vunpack.c.h.b16 %v200
        %v217 = vunpack.c.l.b16 %v201
        %v218 = vunpack.c.h.b16 %v201
        %v219 = vunpack.c.l.b16 %v202
        %v220 = vunpack.c.h.b16 %v202
        %v221 = vpack.c.b16 %v211, %v209
        %v222 = vpack.c.b16 %v212, %v210
        %v223 = vpack.c.b16 %v215, %v213
        %v224 = vpack.c.b16 %v216, %v214
        %v225 = vpack.c.b16 %v219, %v217
        %v226 = vpack.c.b16 %v220, %v218
        %vm233 = vcmask 392192
        %v235 = vsel %vm233, %v196, 0
        %237 = vmatprep.subr.bf16.mxu0 0
        %238 = vmatpush1.bf16.msra.mxu0 0
        %239 = vmatprep.subr.bf16.mxu0 0
        %240 = vmatpush1.bf16.msra.mxu0 0
        %241 = vmatprep.subr.bf16.mxu0 0
        %242 = vmatpush1.bf16.msra.mxu0 0
        %243 = vmatprep.subr.bf16.mxu0 0
        %244 = vmatpush1.bf16.msra.mxu0 0
        %245 = vmatprep.subr.bf16.mxu0 0
        %246 = vmatpush1.bf16.msra.mxu0 0
        %247 = vmatprep.subr.bf16.mxu0 %v226
        %248 = vmatpush1.bf16.msra.mxu0 %v225
        %249 = vmatprep.subr.bf16.mxu0 %v224
        %250 = vmatpush1.bf16.msra.mxu0 %v223
        %251 = vmatprep.subr.bf16.mxu0 %v222
        %252 = vmatpush1.bf16.msra.mxu0 %v221
        %253 = vmatprep.subr.bf16.mxu0 0
        %254 = vmatpush2.bf16.msra.mxu0 0
        %255 = vmatprep.subr.bf16.mxu0 0
        %256 = vmatpush2.bf16.msra.mxu0 0
        %257 = vmatprep.subr.bf16.mxu0 0
        %258 = vmatpush2.bf16.msra.mxu0 0
        %259 = vmatprep.subr.bf16.mxu0 0
        %260 = vmatpush2.bf16.msra.mxu0 0
        %261 = vmatprep.subr.bf16.mxu0 0
        %262 = vmatpush2.bf16.msra.mxu0 0
        %263 = vmatprep.subr.bf16.mxu0 0
        %264 = vmatpush2.bf16.msra.mxu0 0
        %265 = vmatprep.subr.bf16.mxu0 0
        %266 = vmatpush2.bf16.msra.mxu0 0
        %267 = vmatprep.subr.bf16.mxu0 0
        %268 = vmatpush2.bf16.msra.mxu0 0
        %269 = vmatprep.mubr.bf16.mxu0 0
        %270 = vmatmul.mubr.bf16.gmra.mxu0 %v235
        %v271 = vpop.f32.mrf.mxu0
        %v272 = vadd.f32 0.0, %v271
        %v273 = vpop.f32.mrf.mxu0
        %v274 = vadd.f32 0.0, %v273
        %v275 = vpop.f32.mrf.mxu0
        %v276 = vpop.f32.mrf.mxu0
        %277 = vdwg.mxu0
        %v278 = vmax.f32 %v272, 0.0
        %v279 = vmax.f32 %v274, 0.0
        %280 = vst [vmem:[%s192] sm:$0xff] %v278
        %281 = vst [vmem:[%s192 + $0x8] sm:$0xff] %v279
        %s282 = sand.u32 %s91, 1
        %s283 = scalar_lea.sflag [#allocation4], %s282
        %s284 = sand.u32 %s91, 1
        %s285 = smul.addr %s284, 16
        %s286 = scalar_lea.vmem [#allocation7], %s285
        // Predicated region
        $region37: #{tpu_custom_call.1} parent=27 // pred_check
          %p287 = pneg %p101
        $region38: #{tpu_custom_call.1} parent=27 // pred_check_branch
          %289 = sbr.rel (%p287) target = $region40
        $region39: #{tpu_custom_call.1} parent=27 // pred_region
          %s290 = smul.u32 2, %s25
          %s292 = ssub.s32 256, 256
          %293 = vsyncadd %s283, %s292
          %s294 = smul.addr %s24, 2
          %s295 = sadd.s32 %s290, %s294
          %s296 = smul.addr %s295, 128
          %s297 = scalar_lea.hbm %s2, %s296
          %s299 = sshll.u32 %s286, 4
          %s300 = int_to_ptr.vmem [resolvable:$true] %s299
          %302 = dma.vmem_to_hbm [thread:$0]  %s300, 256, %s297, %s283
        $region40: #{tpu_custom_call.1} parent=27 // pred_fallthru
          _
      $region28: #{tpu_custom_call.1} parent=5 // pred_fallthru
        _
      %p303 = scmp.le.s32.totalorder 2, %s15
      // Predicated region
      $region41: #{tpu_custom_call.1} parent=5 // pred_check
        %p304 = pneg %p303
      $region42: #{tpu_custom_call.1} parent=5 // pred_check_branch
        %306 = sbr.rel (%p304) target = $region44
      $region43: #{tpu_custom_call.1} parent=5 // pred_region
        %s307 = ssub.s32 %s15, 2
        // Predicated region
        $region45: #{tpu_custom_call.1} parent=43 // pred_check
          %p308 = pneg %p107
        $region46: #{tpu_custom_call.1} parent=43 // pred_check_branch
          %310 = sbr.rel (%p308) target = $region48
        $region47: #{tpu_custom_call.1} parent=43 // pred_region
          %s311 = sand.u32 %s92, 1
          %s312 = scalar_lea.sflag [#allocation4], %s311
          %s313 = sand.u32 %s92, 1
          %s314 = smul.addr %s313, 16
          %s315 = scalar_lea.vmem [#allocation7], %s314
          %316 = dma.done %s312, 256
        $region48: #{tpu_custom_call.1} parent=43 // pred_fallthru
          _
      $region44: #{tpu_custom_call.1} parent=5 // pred_fallthru
        _
    $region6: #{tpu_custom_call.1} parent=1 // loop_footer
      %s19 = sadd.s32 1, %s15
    $region7: #{tpu_custom_call.1} parent=1 // loop_footer_branch
      %14 = sbr.rel target = $region3
    $region8: #{tpu_custom_call.1} parent=1 // loop_exit
      _
    %317 = vsyncpa [#allocation3], 1
    %s318 = scalar_lea.sflag [#allocation3], 1
    %319 = vsyncpa %s318, 1
    %320 = vsyncpa [#allocation6], 1
    %s321 = scalar_lea.sflag [#allocation6], 1
    %322 = vsyncpa %s321, 1
    %323 = vsyncpa [#allocation4], 1
    %s324 = scalar_lea.sflag [#allocation4], 1
    %325 = vsyncpa %s324, 1

</llo_original>
